<compile_context>
chip_gen: v7x
topology: tpu7x:2x2x1
jax: 0.10.0
libtpu: 0.0.40
codegen_flags: <defaults>
</compile_context>

<pallas_src>
import math

import jax
import jax.numpy as jnp
import numpy as np
from jax.experimental import pallas as pl
from jax.experimental.pallas import tpu as pltpu

# ----- module hyper-parameters (Res1DBlock.__init__ args) --------------------
NUM_CHANNELS = 8
NUM_RES_CONV = 3
DILATION_FACTOR = 2
KERNEL_SIZE = 3          # odd kernel so "same" padding keeps L (residual add valid)
BN_EPS = 1e-5

_INV_SQRT2 = 0.7071067811865476


def _padding_for(dilation):
    return (KERNEL_SIZE + (KERNEL_SIZE - 1) * (dilation - 1) - 1) // 2


def _erf(x):
    # Numerical-Recipes erfc rational approximation (|error| < 1.2e-7): exact
    # enough to match nn.GELU() (approximate='none') within 2e-4.
    a = jnp.abs(x)
    t = 1.0 / (1.0 + 0.5 * a)
    poly = -1.26551223 + t * (1.00002368 + t * (0.37409196 + t * (0.09678418
           + t * (-0.18628806 + t * (0.27886807 + t * (-1.13520398
           + t * (1.48851587 + t * (-0.82215223 + t * 0.17087277))))))))
    erfc_a = t * jnp.exp(-a * a + poly)
    return jnp.where(x >= 0.0, 1.0 - erfc_a, erfc_a - 1.0)


def _gelu(x):
    return 0.5 * x * (1.0 + _erf(x * _INV_SQRT2))


def _shift_lanes(x, s):
    """result[:, g] = x[:, g + s] (static s), zero fill at the global boundary."""
    C, NL = x.shape
    if s == 0:
        return x
    if s > 0:
        return jnp.concatenate([x[:, s:], jnp.zeros((C, s), x.dtype)], axis=1)
    return jnp.concatenate([jnp.zeros((C, -s), x.dtype), x[:, :NL + s]], axis=1)


# ----- Pallas kernel ----------------------------------------------------------
def res1d_kernel(x_ref, w_ref, b_ref, g_ref, bt_ref, m_ref, o_ref):
    # x_ref : (N, C, L)                      input, native PyTorch layout
    # w_ref : (NUM_RES_CONV, C, K*C)         im2col weights  w[idx, co, k*C + ci]
    # b_ref : (NUM_RES_CONV, C, 1)           conv biases
    # g_ref : (NUM_RES_CONV-1, C, 1)         BN gamma
    # bt_ref: (NUM_RES_CONV-1, C, 1)         BN beta
    # m_ref : (NUM_RES_CONV*K, 1, N*L)       per-tap sample-boundary masks
    # o_ref : (N, C, L)                      output
    N, C, L = x_ref.shape
    NL = N * L

    # Channels-on-sublanes / positions-on-lanes working layout (C, N*L).
    cur = jnp.concatenate([x_ref[n] for n in range(N)], axis=-1)

    for idx in range(NUM_RES_CONV):
        d = DILATION_FACTOR ** idx
        p = _padding_for(d)

        # im2col RHS: K boundary-masked lane-shifted copies stacked on sublanes.
        taps = []
        for k in range(KERNEL_SIZE):
            s = k * d - p                          # static per-tap shift
            t = _shift_lanes(cur, s)
            if s != 0:
                # zero lanes whose read crossed a per-sample edge
                t = t * m_ref[idx * KERNEL_SIZE + k]
            taps.append(t)
        rhs = jnp.concatenate(taps, axis=0)        # (K*C, N*L)

        # Single MXU matmul per layer: (C, K*C) @ (K*C, N*L) -> (C, N*L).
        y = jnp.dot(w_ref[idx], rhs, preferred_element_type=jnp.float32)
        y = _gelu(y + b_ref[idx])

        if idx != NUM_RES_CONV - 1:
            # Training-mode BatchNorm1d: biased per-channel stats over (N, L) = lanes,
            # fused single pass (sum + sum-of-squares), folded scale/shift.
            s1 = jnp.sum(y, axis=1, keepdims=True)             # (C, 1)
            s2 = jnp.sum(y * y, axis=1, keepdims=True)         # (C, 1)
            mean = s1 * (1.0 / NL)
            var = s2 * (1.0 / NL) - mean * mean
            scale = g_ref[idx] * jax.lax.rsqrt(var + BN_EPS)   # gamma * inv_std
            shift = bt_ref[idx] - mean * scale                 # beta - mean*scale
            y = y * scale + shift

        cur = y

    # Residual add: re-read the (still VMEM-resident) input instead of keeping a
    # live copy across all layers.
    res = jnp.concatenate([x_ref[n] for n in range(N)], axis=-1)
    out = _gelu(cur + res)
    for n in range(N):
        o_ref[n] = out[:, n * L:(n + 1) * L]


# ----- wrapper ----------------------------------------------------------------
def _build_masks(N, L):
    """f32 masks (NUM_RES_CONV*K, 1, N*L): 1 where the tap reads inside the sample."""
    NL = N * L
    masks = np.ones((NUM_RES_CONV * KERNEL_SIZE, 1, NL), np.float32)
    l = np.arange(L)
    for idx in range(NUM_RES_CONV):
        d = DILATION_FACTOR ** idx
        p = _padding_for(d)
        for k in range(KERNEL_SIZE):
            s = k * d - p
            valid = ((l + s) >= 0) & ((l + s) < L)
            masks[idx * KERNEL_SIZE + k, 0, :] = np.tile(valid.astype(np.float32), N)
    return masks


@jax.jit
def res1d_block(x_ncl, W, b, gamma, beta):
    """x_ncl: (N, C, L) f32.  W: (num_res_conv, C_out, C_in, K) (PyTorch Conv1d layout)."""
    N, C, L = x_ncl.shape
    K = KERNEL_SIZE
    assert _padding_for(DILATION_FACTOR ** (NUM_RES_CONV - 1)) < L

    # (idx, co, ci, k) -> (idx, co, k*C + ci): matches the sublane-stacked im2col taps.
    w2d = jnp.transpose(W, (0, 1, 3, 2)).reshape(NUM_RES_CONV, C, K * C)
    b2 = b.reshape(NUM_RES_CONV, C, 1)
    g2 = gamma.reshape(NUM_RES_CONV - 1, C, 1)
    bt2 = beta.reshape(NUM_RES_CONV - 1, C, 1)
    masks = jnp.asarray(_build_masks(N, L))

    return pl.pallas_call(
        res1d_kernel,
        out_shape=jax.ShapeDtypeStruct((N, C, L), jnp.float32),
        in_specs=[pl.BlockSpec(memory_space=pltpu.MemorySpace.VMEM)] * 6,
        out_specs=pl.BlockSpec(memory_space=pltpu.MemorySpace.VMEM),
    )(x_ncl, w2d, b2, g2, bt2, masks)


# ----- pure-JAX reference (for correctness check) -----------------------------
def _gelu_exact(x):
    return 0.5 * x * (1.0 + jax.scipy.special.erf(x * _INV_SQRT2))


def reference(x_ncl, W, b, gamma, beta):
    C = x_ncl.shape[1]
    x = x_ncl
    x0 = x
    for idx in range(NUM_RES_CONV):
        d = DILATION_FACTOR ** idx
        p = _padding_for(d)
        y = jax.lax.conv_general_dilated(
            x, W[idx], window_strides=(1,), padding=[(p, p)],
            rhs_dilation=(d,), dimension_numbers=("NCH", "OIH", "NCH"))
        y = y + b[idx].reshape(1, C, 1)
        y = _gelu_exact(y)
        if idx != NUM_RES_CONV - 1:
            mean = jnp.mean(y, axis=(0, 2), keepdims=True)
            var = jnp.mean((y - mean) ** 2, axis=(0, 2), keepdims=True)
            y = (y - mean) * jax.lax.rsqrt(var + BN_EPS)
            y = y * gamma[idx].reshape(1, C, 1) + beta[idx].reshape(1, C, 1)
        x = y
    return _gelu_exact(x + x0)


# ----- main -------------------------------------------------------------------
if __name__ == "__main__":
    N, C, L = 2, NUM_CHANNELS, 16

    key = jax.random.PRNGKey(0)
    kx, kw, kb, kg, kbt = jax.random.split(key, 5)

    x = jax.random.normal(kx, (N, C, L), jnp.float32)
    W = jax.random.normal(kw, (NUM_RES_CONV, C, C, KERNEL_SIZE), jnp.float32) \
        / math.sqrt(C * KERNEL_SIZE)
    b = 0.1 * jax.random.normal(kb, (NUM_RES_CONV, C), jnp.float32)
    gamma = 1.0 + 0.1 * jax.random.normal(kg, (NUM_RES_CONV - 1, C), jnp.float32)
    beta = 0.1 * jax.random.normal(kbt, (NUM_RES_CONV - 1, C), jnp.float32)

    out = res1d_block(x, W, b, gamma, beta)
    jax.block_until_ready(out)

    ref = reference(x, W, b, gamma, beta)
    np.testing.assert_allclose(np.asarray(out), np.asarray(ref), rtol=2e-4, atol=2e-4)

    print("KERNEL_OK")
</pallas_src>

<mosaic_0001>
module attributes {stable_mosaic.version = 11 : i64} {
  func.func @res1d_kernel(%arg0: memref<2x8x16xf32, #tpu.memory_space<vmem>>, %arg1: memref<3x8x24xf32, #tpu.memory_space<vmem>>, %arg2: memref<3x8x1xf32, #tpu.memory_space<vmem>>, %arg3: memref<2x8x1xf32, #tpu.memory_space<vmem>>, %arg4: memref<2x8x1xf32, #tpu.memory_space<vmem>>, %arg5: memref<9x1x32xf32, #tpu.memory_space<vmem>>, %arg6: memref<2x8x16xf32, #tpu.memory_space<vmem>>) attributes {dimension_semantics = [], scalar_prefetch = 0 : i64, scratch_operands = 0 : i64, tpu.core_type = #tpu.core_type<tc>} {
    %c0 = arith.constant 0 : index
    %c0_0 = arith.constant 0 : index
    %c0_1 = arith.constant 0 : index
    %0 = vector.load %arg0[%c0, %c0_0, %c0_1] : memref<2x8x16xf32, #tpu.memory_space<vmem>>, vector<1x8x16xf32>
    %1 = vector.shape_cast %0 : vector<1x8x16xf32> to vector<8x16xf32>
    %c1 = arith.constant 1 : index
    %c0_2 = arith.constant 0 : index
    %c0_3 = arith.constant 0 : index
    %2 = vector.load %arg0[%c1, %c0_2, %c0_3] : memref<2x8x16xf32, #tpu.memory_space<vmem>>, vector<1x8x16xf32>
    %3 = vector.shape_cast %2 : vector<1x8x16xf32> to vector<8x16xf32>
    %4 = tpu.concatenate %1, %3 in 1 : vector<8x16xf32>, vector<8x16xf32> -> vector<8x32xf32>
    %cst = arith.constant 0.000000e+00 : f32
    %5 = vector.broadcast %cst : f32 to vector<8x1xf32>
    %6 = vector.extract_strided_slice %4 {offsets = [0, 0], sizes = [8, 31], strides = [1, 1]} : vector<8x32xf32> to vector<8x31xf32>
    %7 = tpu.concatenate %5, %6 in 1 : vector<8x1xf32>, vector<8x31xf32> -> vector<8x32xf32>
    %c0_4 = arith.constant 0 : index
    %c0_5 = arith.constant 0 : index
    %c0_6 = arith.constant 0 : index
    %8 = vector.load %arg5[%c0_4, %c0_5, %c0_6] : memref<9x1x32xf32, #tpu.memory_space<vmem>>, vector<1x1x32xf32>
    %9 = vector.shape_cast %8 : vector<1x1x32xf32> to vector<1x32xf32>
    %10 = vector.broadcast %9 : vector<1x32xf32> to vector<8x32xf32>
    %11 = arith.mulf %7, %10 : vector<8x32xf32>
    %12 = vector.extract_strided_slice %4 {offsets = [0, 1], sizes = [8, 31], strides = [1, 1]} : vector<8x32xf32> to vector<8x31xf32>
    %cst_7 = arith.constant 0.000000e+00 : f32
    %13 = vector.broadcast %cst_7 : f32 to vector<8x1xf32>
    %14 = tpu.concatenate %12, %13 in 1 : vector<8x31xf32>, vector<8x1xf32> -> vector<8x32xf32>
    %c2 = arith.constant 2 : index
    %c0_8 = arith.constant 0 : index
    %c0_9 = arith.constant 0 : index
    %15 = vector.load %arg5[%c2, %c0_8, %c0_9] : memref<9x1x32xf32, #tpu.memory_space<vmem>>, vector<1x1x32xf32>
    %16 = vector.shape_cast %15 : vector<1x1x32xf32> to vector<1x32xf32>
    %17 = vector.broadcast %16 : vector<1x32xf32> to vector<8x32xf32>
    %18 = arith.mulf %14, %17 : vector<8x32xf32>
    %19 = tpu.concatenate %11, %4, %18 in 0 : vector<8x32xf32>, vector<8x32xf32>, vector<8x32xf32> -> vector<24x32xf32>
    %c0_10 = arith.constant 0 : index
    %c0_11 = arith.constant 0 : index
    %c0_12 = arith.constant 0 : index
    %20 = vector.load %arg1[%c0_10, %c0_11, %c0_12] : memref<3x8x24xf32, #tpu.memory_space<vmem>>, vector<1x8x24xf32>
    %21 = vector.shape_cast %20 : vector<1x8x24xf32> to vector<8x24xf32>
    %cst_13 = arith.constant dense<0.000000e+00> : vector<8x32xf32>
    %22 = tpu.matmul %21, %19, %cst_13 {dimension_numbers = #tpu.dot_dimension_numbers<[1], [0], [0], [1], [0, 0, 1, 1], [], []>} : vector<8x24xf32>, vector<24x32xf32>, vector<8x32xf32> -> vector<8x32xf32>
    %c0_14 = arith.constant 0 : index
    %c0_15 = arith.constant 0 : index
    %c0_16 = arith.constant 0 : index
    %23 = vector.load %arg2[%c0_14, %c0_15, %c0_16] : memref<3x8x1xf32, #tpu.memory_space<vmem>>, vector<1x8x1xf32>
    %24 = vector.shape_cast %23 : vector<1x8x1xf32> to vector<8x1xf32>
    %25 = vector.broadcast %24 : vector<8x1xf32> to vector<8x32xf32>
    %26 = arith.addf %22, %25 : vector<8x32xf32>
    %cst_17 = arith.constant 5.000000e-01 : f32
    %27 = vector.broadcast %cst_17 : f32 to vector<8x32xf32>
    %28 = arith.mulf %27, %26 : vector<8x32xf32>
    %cst_18 = arith.constant 0.707106769 : f32
    %29 = vector.broadcast %cst_18 : f32 to vector<8x32xf32>
    %30 = arith.mulf %26, %29 : vector<8x32xf32>
    %31 = math.absf %30 : vector<8x32xf32>
    %cst_19 = arith.constant 5.000000e-01 : f32
    %32 = vector.broadcast %cst_19 : f32 to vector<8x32xf32>
    %33 = arith.mulf %32, %31 : vector<8x32xf32>
    %cst_20 = arith.constant 1.000000e+00 : f32
    %34 = vector.broadcast %cst_20 : f32 to vector<8x32xf32>
    %35 = arith.addf %34, %33 : vector<8x32xf32>
    %cst_21 = arith.constant 1.000000e+00 : f32
    %36 = vector.broadcast %cst_21 : f32 to vector<8x32xf32>
    %37 = arith.divf %36, %35 : vector<8x32xf32>
    %cst_22 = arith.constant 0.170872763 : f32
    %38 = vector.broadcast %cst_22 : f32 to vector<8x32xf32>
    %39 = arith.mulf %37, %38 : vector<8x32xf32>
    %cst_23 = arith.constant -0.822152256 : f32
    %40 = vector.broadcast %cst_23 : f32 to vector<8x32xf32>
    %41 = arith.addf %40, %39 : vector<8x32xf32>
    %42 = arith.mulf %37, %41 : vector<8x32xf32>
    %cst_24 = arith.constant 1.48851585 : f32
    %43 = vector.broadcast %cst_24 : f32 to vector<8x32xf32>
    %44 = arith.addf %43, %42 : vector<8x32xf32>
    %45 = arith.mulf %37, %44 : vector<8x32xf32>
    %cst_25 = arith.constant -1.13520396 : f32
    %46 = vector.broadcast %cst_25 : f32 to vector<8x32xf32>
    %47 = arith.addf %46, %45 : vector<8x32xf32>
    %48 = arith.mulf %37, %47 : vector<8x32xf32>
    %cst_26 = arith.constant 0.278868079 : f32
    %49 = vector.broadcast %cst_26 : f32 to vector<8x32xf32>
    %50 = arith.addf %49, %48 : vector<8x32xf32>
    %51 = arith.mulf %37, %50 : vector<8x32xf32>
    %cst_27 = arith.constant -0.186288059 : f32
    %52 = vector.broadcast %cst_27 : f32 to vector<8x32xf32>
    %53 = arith.addf %52, %51 : vector<8x32xf32>
    %54 = arith.mulf %37, %53 : vector<8x32xf32>
    %cst_28 = arith.constant 0.0967841818 : f32
    %55 = vector.broadcast %cst_28 : f32 to vector<8x32xf32>
    %56 = arith.addf %55, %54 : vector<8x32xf32>
    %57 = arith.mulf %37, %56 : vector<8x32xf32>
    %cst_29 = arith.constant 0.374091953 : f32
    %58 = vector.broadcast %cst_29 : f32 to vector<8x32xf32>
    %59 = arith.addf %58, %57 : vector<8x32xf32>
    %60 = arith.mulf %37, %59 : vector<8x32xf32>
    %cst_30 = arith.constant 1.00002372 : f32
    %61 = vector.broadcast %cst_30 : f32 to vector<8x32xf32>
    %62 = arith.addf %61, %60 : vector<8x32xf32>
    %63 = arith.mulf %37, %62 : vector<8x32xf32>
    %cst_31 = arith.constant -1.26551223 : f32
    %64 = vector.broadcast %cst_31 : f32 to vector<8x32xf32>
    %65 = arith.addf %64, %63 : vector<8x32xf32>
    %cst_32 = arith.constant 0.000000e+00 : f32
    %66 = vector.broadcast %cst_32 : f32 to vector<8x32xf32>
    %67 = arith.subf %66, %31 : vector<8x32xf32>
    %68 = arith.mulf %67, %31 : vector<8x32xf32>
    %69 = arith.addf %68, %65 : vector<8x32xf32>
    %70 = math.exp %69 : vector<8x32xf32>
    %71 = arith.mulf %37, %70 : vector<8x32xf32>
    %cst_33 = arith.constant 0.000000e+00 : f32
    %72 = vector.broadcast %cst_33 : f32 to vector<8x32xf32>
    %73 = arith.cmpf oge, %30, %72 : vector<8x32xf32>
    %cst_34 = arith.constant 1.000000e+00 : f32
    %74 = vector.broadcast %cst_34 : f32 to vector<8x32xf32>
    %75 = arith.subf %74, %71 : vector<8x32xf32>
    %cst_35 = arith.constant 1.000000e+00 : f32
    %76 = vector.broadcast %cst_35 : f32 to vector<8x32xf32>
    %77 = arith.subf %71, %76 : vector<8x32xf32>
    %78 = arith.select %73, %75, %77 : vector<8x32xi1>, vector<8x32xf32>
    %cst_36 = arith.constant 1.000000e+00 : f32
    %79 = vector.broadcast %cst_36 : f32 to vector<8x32xf32>
    %80 = arith.addf %79, %78 : vector<8x32xf32>
    %81 = arith.mulf %28, %80 : vector<8x32xf32>
    %cst_37 = arith.constant dense<0.000000e+00> : vector<8xf32>
    %82 = vector.multi_reduction <add>, %81, %cst_37 [1] : vector<8x32xf32> to vector<8xf32>
    %83 = vector.shape_cast %82 : vector<8xf32> to vector<8x1xf32>
    %84 = arith.mulf %81, %81 : vector<8x32xf32>
    %cst_38 = arith.constant dense<0.000000e+00> : vector<8xf32>
    %85 = vector.multi_reduction <add>, %84, %cst_38 [1] : vector<8x32xf32> to vector<8xf32>
    %86 = vector.shape_cast %85 : vector<8xf32> to vector<8x1xf32>
    %cst_39 = arith.constant 3.125000e-02 : f32
    %87 = vector.broadcast %cst_39 : f32 to vector<8x1xf32>
    %88 = arith.mulf %83, %87 : vector<8x1xf32>
    %cst_40 = arith.constant 3.125000e-02 : f32
    %89 = vector.broadcast %cst_40 : f32 to vector<8x1xf32>
    %90 = arith.mulf %86, %89 : vector<8x1xf32>
    %91 = arith.mulf %88, %88 : vector<8x1xf32>
    %92 = arith.subf %90, %91 : vector<8x1xf32>
    %c0_41 = arith.constant 0 : index
    %c0_42 = arith.constant 0 : index
    %c0_43 = arith.constant 0 : index
    %93 = vector.load %arg3[%c0_41, %c0_42, %c0_43] : memref<2x8x1xf32, #tpu.memory_space<vmem>>, vector<1x8x1xf32>
    %94 = vector.shape_cast %93 : vector<1x8x1xf32> to vector<8x1xf32>
    %cst_44 = arith.constant 9.99999974E-6 : f32
    %95 = vector.broadcast %cst_44 : f32 to vector<8x1xf32>
    %96 = arith.addf %92, %95 : vector<8x1xf32>
    %97 = math.rsqrt %96 : vector<8x1xf32>
    %98 = arith.mulf %94, %97 : vector<8x1xf32>
    %c0_45 = arith.constant 0 : index
    %c0_46 = arith.constant 0 : index
    %c0_47 = arith.constant 0 : index
    %99 = vector.load %arg4[%c0_45, %c0_46, %c0_47] : memref<2x8x1xf32, #tpu.memory_space<vmem>>, vector<1x8x1xf32>
    %100 = vector.shape_cast %99 : vector<1x8x1xf32> to vector<8x1xf32>
    %101 = arith.mulf %88, %98 : vector<8x1xf32>
    %102 = arith.subf %100, %101 : vector<8x1xf32>
    %103 = vector.broadcast %98 : vector<8x1xf32> to vector<8x32xf32>
    %104 = arith.mulf %81, %103 : vector<8x32xf32>
    %105 = vector.broadcast %102 : vector<8x1xf32> to vector<8x32xf32>
    %106 = arith.addf %104, %105 : vector<8x32xf32>
    %cst_48 = arith.constant 0.000000e+00 : f32
    %107 = vector.broadcast %cst_48 : f32 to vector<8x2xf32>
    %108 = vector.extract_strided_slice %106 {offsets = [0, 0], sizes = [8, 30], strides = [1, 1]} : vector<8x32xf32> to vector<8x30xf32>
    %109 = tpu.concatenate %107, %108 in 1 : vector<8x2xf32>, vector<8x30xf32> -> vector<8x32xf32>
    %c3 = arith.constant 3 : index
    %c0_49 = arith.constant 0 : index
    %c0_50 = arith.constant 0 : index
    %110 = vector.load %arg5[%c3, %c0_49, %c0_50] : memref<9x1x32xf32, #tpu.memory_space<vmem>>, vector<1x1x32xf32>
    %111 = vector.shape_cast %110 : vector<1x1x32xf32> to vector<1x32xf32>
    %112 = vector.broadcast %111 : vector<1x32xf32> to vector<8x32xf32>
    %113 = arith.mulf %109, %112 : vector<8x32xf32>
    %114 = vector.extract_strided_slice %106 {offsets = [0, 2], sizes = [8, 30], strides = [1, 1]} : vector<8x32xf32> to vector<8x30xf32>
    %cst_51 = arith.constant 0.000000e+00 : f32
    %115 = vector.broadcast %cst_51 : f32 to vector<8x2xf32>
    %116 = tpu.concatenate %114, %115 in 1 : vector<8x30xf32>, vector<8x2xf32> -> vector<8x32xf32>
    %c5 = arith.constant 5 : index
    %c0_52 = arith.constant 0 : index
    %c0_53 = arith.constant 0 : index
    %117 = vector.load %arg5[%c5, %c0_52, %c0_53] : memref<9x1x32xf32, #tpu.memory_space<vmem>>, vector<1x1x32xf32>
    %118 = vector.shape_cast %117 : vector<1x1x32xf32> to vector<1x32xf32>
    %119 = vector.broadcast %118 : vector<1x32xf32> to vector<8x32xf32>
    %120 = arith.mulf %116, %119 : vector<8x32xf32>
    %121 = tpu.concatenate %113, %106, %120 in 0 : vector<8x32xf32>, vector<8x32xf32>, vector<8x32xf32> -> vector<24x32xf32>
    %c1_54 = arith.constant 1 : index
    %c0_55 = arith.constant 0 : index
    %c0_56 = arith.constant 0 : index
    %122 = vector.load %arg1[%c1_54, %c0_55, %c0_56] : memref<3x8x24xf32, #tpu.memory_space<vmem>>, vector<1x8x24xf32>
    %123 = vector.shape_cast %122 : vector<1x8x24xf32> to vector<8x24xf32>
    %cst_57 = arith.constant dense<0.000000e+00> : vector<8x32xf32>
    %124 = tpu.matmul %123, %121, %cst_57 {dimension_numbers = #tpu.dot_dimension_numbers<[1], [0], [0], [1], [0, 0, 1, 1], [], []>} : vector<8x24xf32>, vector<24x32xf32>, vector<8x32xf32> -> vector<8x32xf32>
    %c1_58 = arith.constant 1 : index
    %c0_59 = arith.constant 0 : index
    %c0_60 = arith.constant 0 : index
    %125 = vector.load %arg2[%c1_58, %c0_59, %c0_60] : memref<3x8x1xf32, #tpu.memory_space<vmem>>, vector<1x8x1xf32>
    %126 = vector.shape_cast %125 : vector<1x8x1xf32> to vector<8x1xf32>
    %127 = vector.broadcast %126 : vector<8x1xf32> to vector<8x32xf32>
    %128 = arith.addf %124, %127 : vector<8x32xf32>
    %cst_61 = arith.constant 5.000000e-01 : f32
    %129 = vector.broadcast %cst_61 : f32 to vector<8x32xf32>
    %130 = arith.mulf %129, %128 : vector<8x32xf32>
    %cst_62 = arith.constant 0.707106769 : f32
    %131 = vector.broadcast %cst_62 : f32 to vector<8x32xf32>
    %132 = arith.mulf %128, %131 : vector<8x32xf32>
    %133 = math.absf %132 : vector<8x32xf32>
    %cst_63 = arith.constant 5.000000e-01 : f32
    %134 = vector.broadcast %cst_63 : f32 to vector<8x32xf32>
    %135 = arith.mulf %134, %133 : vector<8x32xf32>
    %cst_64 = arith.constant 1.000000e+00 : f32
    %136 = vector.broadcast %cst_64 : f32 to vector<8x32xf32>
    %137 = arith.addf %136, %135 : vector<8x32xf32>
    %cst_65 = arith.constant 1.000000e+00 : f32
    %138 = vector.broadcast %cst_65 : f32 to vector<8x32xf32>
    %139 = arith.divf %138, %137 : vector<8x32xf32>
    %cst_66 = arith.constant 0.170872763 : f32
    %140 = vector.broadcast %cst_66 : f32 to vector<8x32xf32>
    %141 = arith.mulf %139, %140 : vector<8x32xf32>
    %cst_67 = arith.constant -0.822152256 : f32
    %142 = vector.broadcast %cst_67 : f32 to vector<8x32xf32>
    %143 = arith.addf %142, %141 : vector<8x32xf32>
    %144 = arith.mulf %139, %143 : vector<8x32xf32>
    %cst_68 = arith.constant 1.48851585 : f32
    %145 = vector.broadcast %cst_68 : f32 to vector<8x32xf32>
    %146 = arith.addf %145, %144 : vector<8x32xf32>
    %147 = arith.mulf %139, %146 : vector<8x32xf32>
    %cst_69 = arith.constant -1.13520396 : f32
    %148 = vector.broadcast %cst_69 : f32 to vector<8x32xf32>
    %149 = arith.addf %148, %147 : vector<8x32xf32>
    %150 = arith.mulf %139, %149 : vector<8x32xf32>
    %cst_70 = arith.constant 0.278868079 : f32
    %151 = vector.broadcast %cst_70 : f32 to vector<8x32xf32>
    %152 = arith.addf %151, %150 : vector<8x32xf32>
    %153 = arith.mulf %139, %152 : vector<8x32xf32>
    %cst_71 = arith.constant -0.186288059 : f32
    %154 = vector.broadcast %cst_71 : f32 to vector<8x32xf32>
    %155 = arith.addf %154, %153 : vector<8x32xf32>
    %156 = arith.mulf %139, %155 : vector<8x32xf32>
    %cst_72 = arith.constant 0.0967841818 : f32
    %157 = vector.broadcast %cst_72 : f32 to vector<8x32xf32>
    %158 = arith.addf %157, %156 : vector<8x32xf32>
    %159 = arith.mulf %139, %158 : vector<8x32xf32>
    %cst_73 = arith.constant 0.374091953 : f32
    %160 = vector.broadcast %cst_73 : f32 to vector<8x32xf32>
    %161 = arith.addf %160, %159 : vector<8x32xf32>
    %162 = arith.mulf %139, %161 : vector<8x32xf32>
    %cst_74 = arith.constant 1.00002372 : f32
    %163 = vector.broadcast %cst_74 : f32 to vector<8x32xf32>
    %164 = arith.addf %163, %162 : vector<8x32xf32>
    %165 = arith.mulf %139, %164 : vector<8x32xf32>
    %cst_75 = arith.constant -1.26551223 : f32
    %166 = vector.broadcast %cst_75 : f32 to vector<8x32xf32>
    %167 = arith.addf %166, %165 : vector<8x32xf32>
    %cst_76 = arith.constant 0.000000e+00 : f32
    %168 = vector.broadcast %cst_76 : f32 to vector<8x32xf32>
    %169 = arith.subf %168, %133 : vector<8x32xf32>
    %170 = arith.mulf %169, %133 : vector<8x32xf32>
    %171 = arith.addf %170, %167 : vector<8x32xf32>
    %172 = math.exp %171 : vector<8x32xf32>
    %173 = arith.mulf %139, %172 : vector<8x32xf32>
    %cst_77 = arith.constant 0.000000e+00 : f32
    %174 = vector.broadcast %cst_77 : f32 to vector<8x32xf32>
    %175 = arith.cmpf oge, %132, %174 : vector<8x32xf32>
    %cst_78 = arith.constant 1.000000e+00 : f32
    %176 = vector.broadcast %cst_78 : f32 to vector<8x32xf32>
    %177 = arith.subf %176, %173 : vector<8x32xf32>
    %cst_79 = arith.constant 1.000000e+00 : f32
    %178 = vector.broadcast %cst_79 : f32 to vector<8x32xf32>
    %179 = arith.subf %173, %178 : vector<8x32xf32>
    %180 = arith.select %175, %177, %179 : vector<8x32xi1>, vector<8x32xf32>
    %cst_80 = arith.constant 1.000000e+00 : f32
    %181 = vector.broadcast %cst_80 : f32 to vector<8x32xf32>
    %182 = arith.addf %181, %180 : vector<8x32xf32>
    %183 = arith.mulf %130, %182 : vector<8x32xf32>
    %cst_81 = arith.constant dense<0.000000e+00> : vector<8xf32>
    %184 = vector.multi_reduction <add>, %183, %cst_81 [1] : vector<8x32xf32> to vector<8xf32>
    %185 = vector.shape_cast %184 : vector<8xf32> to vector<8x1xf32>
    %186 = arith.mulf %183, %183 : vector<8x32xf32>
    %cst_82 = arith.constant dense<0.000000e+00> : vector<8xf32>
    %187 = vector.multi_reduction <add>, %186, %cst_82 [1] : vector<8x32xf32> to vector<8xf32>
    %188 = vector.shape_cast %187 : vector<8xf32> to vector<8x1xf32>
    %cst_83 = arith.constant 3.125000e-02 : f32
    %189 = vector.broadcast %cst_83 : f32 to vector<8x1xf32>
    %190 = arith.mulf %185, %189 : vector<8x1xf32>
    %cst_84 = arith.constant 3.125000e-02 : f32
    %191 = vector.broadcast %cst_84 : f32 to vector<8x1xf32>
    %192 = arith.mulf %188, %191 : vector<8x1xf32>
    %193 = arith.mulf %190, %190 : vector<8x1xf32>
    %194 = arith.subf %192, %193 : vector<8x1xf32>
    %c1_85 = arith.constant 1 : index
    %c0_86 = arith.constant 0 : index
    %c0_87 = arith.constant 0 : index
    %195 = vector.load %arg3[%c1_85, %c0_86, %c0_87] : memref<2x8x1xf32, #tpu.memory_space<vmem>>, vector<1x8x1xf32>
    %196 = vector.shape_cast %195 : vector<1x8x1xf32> to vector<8x1xf32>
    %cst_88 = arith.constant 9.99999974E-6 : f32
    %197 = vector.broadcast %cst_88 : f32 to vector<8x1xf32>
    %198 = arith.addf %194, %197 : vector<8x1xf32>
    %199 = math.rsqrt %198 : vector<8x1xf32>
    %200 = arith.mulf %196, %199 : vector<8x1xf32>
    %c1_89 = arith.constant 1 : index
    %c0_90 = arith.constant 0 : index
    %c0_91 = arith.constant 0 : index
    %201 = vector.load %arg4[%c1_89, %c0_90, %c0_91] : memref<2x8x1xf32, #tpu.memory_space<vmem>>, vector<1x8x1xf32>
    %202 = vector.shape_cast %201 : vector<1x8x1xf32> to vector<8x1xf32>
    %203 = arith.mulf %190, %200 : vector<8x1xf32>
    %204 = arith.subf %202, %203 : vector<8x1xf32>
    %205 = vector.broadcast %200 : vector<8x1xf32> to vector<8x32xf32>
    %206 = arith.mulf %183, %205 : vector<8x32xf32>
    %207 = vector.broadcast %204 : vector<8x1xf32> to vector<8x32xf32>
    %208 = arith.addf %206, %207 : vector<8x32xf32>
    %cst_92 = arith.constant 0.000000e+00 : f32
    %209 = vector.broadcast %cst_92 : f32 to vector<8x4xf32>
    %210 = vector.extract_strided_slice %208 {offsets = [0, 0], sizes = [8, 28], strides = [1, 1]} : vector<8x32xf32> to vector<8x28xf32>
    %211 = tpu.concatenate %209, %210 in 1 : vector<8x4xf32>, vector<8x28xf32> -> vector<8x32xf32>
    %c6 = arith.constant 6 : index
    %c0_93 = arith.constant 0 : index
    %c0_94 = arith.constant 0 : index
    %212 = vector.load %arg5[%c6, %c0_93, %c0_94] : memref<9x1x32xf32, #tpu.memory_space<vmem>>, vector<1x1x32xf32>
    %213 = vector.shape_cast %212 : vector<1x1x32xf32> to vector<1x32xf32>
    %214 = vector.broadcast %213 : vector<1x32xf32> to vector<8x32xf32>
    %215 = arith.mulf %211, %214 : vector<8x32xf32>
    %216 = vector.extract_strided_slice %208 {offsets = [0, 4], sizes = [8, 28], strides = [1, 1]} : vector<8x32xf32> to vector<8x28xf32>
    %cst_95 = arith.constant 0.000000e+00 : f32
    %217 = vector.broadcast %cst_95 : f32 to vector<8x4xf32>
    %218 = tpu.concatenate %216, %217 in 1 : vector<8x28xf32>, vector<8x4xf32> -> vector<8x32xf32>
    %c8 = arith.constant 8 : index
    %c0_96 = arith.constant 0 : index
    %c0_97 = arith.constant 0 : index
    %219 = vector.load %arg5[%c8, %c0_96, %c0_97] : memref<9x1x32xf32, #tpu.memory_space<vmem>>, vector<1x1x32xf32>
    %220 = vector.shape_cast %219 : vector<1x1x32xf32> to vector<1x32xf32>
    %221 = vector.broadcast %220 : vector<1x32xf32> to vector<8x32xf32>
    %222 = arith.mulf %218, %221 : vector<8x32xf32>
    %223 = tpu.concatenate %215, %208, %222 in 0 : vector<8x32xf32>, vector<8x32xf32>, vector<8x32xf32> -> vector<24x32xf32>
    %c2_98 = arith.constant 2 : index
    %c0_99 = arith.constant 0 : index
    %c0_100 = arith.constant 0 : index
    %224 = vector.load %arg1[%c2_98, %c0_99, %c0_100] : memref<3x8x24xf32, #tpu.memory_space<vmem>>, vector<1x8x24xf32>
    %225 = vector.shape_cast %224 : vector<1x8x24xf32> to vector<8x24xf32>
    %cst_101 = arith.constant dense<0.000000e+00> : vector<8x32xf32>
    %226 = tpu.matmul %225, %223, %cst_101 {dimension_numbers = #tpu.dot_dimension_numbers<[1], [0], [0], [1], [0, 0, 1, 1], [], []>} : vector<8x24xf32>, vector<24x32xf32>, vector<8x32xf32> -> vector<8x32xf32>
    %c2_102 = arith.constant 2 : index
    %c0_103 = arith.constant 0 : index
    %c0_104 = arith.constant 0 : index
    %227 = vector.load %arg2[%c2_102, %c0_103, %c0_104] : memref<3x8x1xf32, #tpu.memory_space<vmem>>, vector<1x8x1xf32>
    %228 = vector.shape_cast %227 : vector<1x8x1xf32> to vector<8x1xf32>
    %229 = vector.broadcast %228 : vector<8x1xf32> to vector<8x32xf32>
    %230 = arith.addf %226, %229 : vector<8x32xf32>
    %cst_105 = arith.constant 5.000000e-01 : f32
    %231 = vector.broadcast %cst_105 : f32 to vector<8x32xf32>
    %232 = arith.mulf %231, %230 : vector<8x32xf32>
    %cst_106 = arith.constant 0.707106769 : f32
    %233 = vector.broadcast %cst_106 : f32 to vector<8x32xf32>
    %234 = arith.mulf %230, %233 : vector<8x32xf32>
    %235 = math.absf %234 : vector<8x32xf32>
    %cst_107 = arith.constant 5.000000e-01 : f32
    %236 = vector.broadcast %cst_107 : f32 to vector<8x32xf32>
    %237 = arith.mulf %236, %235 : vector<8x32xf32>
    %cst_108 = arith.constant 1.000000e+00 : f32
    %238 = vector.broadcast %cst_108 : f32 to vector<8x32xf32>
    %239 = arith.addf %238, %237 : vector<8x32xf32>
    %cst_109 = arith.constant 1.000000e+00 : f32
    %240 = vector.broadcast %cst_109 : f32 to vector<8x32xf32>
    %241 = arith.divf %240, %239 : vector<8x32xf32>
    %cst_110 = arith.constant 0.170872763 : f32
    %242 = vector.broadcast %cst_110 : f32 to vector<8x32xf32>
    %243 = arith.mulf %241, %242 : vector<8x32xf32>
    %cst_111 = arith.constant -0.822152256 : f32
    %244 = vector.broadcast %cst_111 : f32 to vector<8x32xf32>
    %245 = arith.addf %244, %243 : vector<8x32xf32>
    %246 = arith.mulf %241, %245 : vector<8x32xf32>
    %cst_112 = arith.constant 1.48851585 : f32
    %247 = vector.broadcast %cst_112 : f32 to vector<8x32xf32>
    %248 = arith.addf %247, %246 : vector<8x32xf32>
    %249 = arith.mulf %241, %248 : vector<8x32xf32>
    %cst_113 = arith.constant -1.13520396 : f32
    %250 = vector.broadcast %cst_113 : f32 to vector<8x32xf32>
    %251 = arith.addf %250, %249 : vector<8x32xf32>
    %252 = arith.mulf %241, %251 : vector<8x32xf32>
    %cst_114 = arith.constant 0.278868079 : f32
    %253 = vector.broadcast %cst_114 : f32 to vector<8x32xf32>
    %254 = arith.addf %253, %252 : vector<8x32xf32>
    %255 = arith.mulf %241, %254 : vector<8x32xf32>
    %cst_115 = arith.constant -0.186288059 : f32
    %256 = vector.broadcast %cst_115 : f32 to vector<8x32xf32>
    %257 = arith.addf %256, %255 : vector<8x32xf32>
    %258 = arith.mulf %241, %257 : vector<8x32xf32>
    %cst_116 = arith.constant 0.0967841818 : f32
    %259 = vector.broadcast %cst_116 : f32 to vector<8x32xf32>
    %260 = arith.addf %259, %258 : vector<8x32xf32>
    %261 = arith.mulf %241, %260 : vector<8x32xf32>
    %cst_117 = arith.constant 0.374091953 : f32
    %262 = vector.broadcast %cst_117 : f32 to vector<8x32xf32>
    %263 = arith.addf %262, %261 : vector<8x32xf32>
    %264 = arith.mulf %241, %263 : vector<8x32xf32>
    %cst_118 = arith.constant 1.00002372 : f32
    %265 = vector.broadcast %cst_118 : f32 to vector<8x32xf32>
    %266 = arith.addf %265, %264 : vector<8x32xf32>
    %267 = arith.mulf %241, %266 : vector<8x32xf32>
    %cst_119 = arith.constant -1.26551223 : f32
    %268 = vector.broadcast %cst_119 : f32 to vector<8x32xf32>
    %269 = arith.addf %268, %267 : vector<8x32xf32>
    %cst_120 = arith.constant 0.000000e+00 : f32
    %270 = vector.broadcast %cst_120 : f32 to vector<8x32xf32>
    %271 = arith.subf %270, %235 : vector<8x32xf32>
    %272 = arith.mulf %271, %235 : vector<8x32xf32>
    %273 = arith.addf %272, %269 : vector<8x32xf32>
    %274 = math.exp %273 : vector<8x32xf32>
    %275 = arith.mulf %241, %274 : vector<8x32xf32>
    %cst_121 = arith.constant 0.000000e+00 : f32
    %276 = vector.broadcast %cst_121 : f32 to vector<8x32xf32>
    %277 = arith.cmpf oge, %234, %276 : vector<8x32xf32>
    %cst_122 = arith.constant 1.000000e+00 : f32
    %278 = vector.broadcast %cst_122 : f32 to vector<8x32xf32>
    %279 = arith.subf %278, %275 : vector<8x32xf32>
    %cst_123 = arith.constant 1.000000e+00 : f32
    %280 = vector.broadcast %cst_123 : f32 to vector<8x32xf32>
    %281 = arith.subf %275, %280 : vector<8x32xf32>
    %282 = arith.select %277, %279, %281 : vector<8x32xi1>, vector<8x32xf32>
    %cst_124 = arith.constant 1.000000e+00 : f32
    %283 = vector.broadcast %cst_124 : f32 to vector<8x32xf32>
    %284 = arith.addf %283, %282 : vector<8x32xf32>
    %285 = arith.mulf %232, %284 : vector<8x32xf32>
    %c0_125 = arith.constant 0 : index
    %c0_126 = arith.constant 0 : index
    %c0_127 = arith.constant 0 : index
    %286 = vector.load %arg0[%c0_125, %c0_126, %c0_127] : memref<2x8x16xf32, #tpu.memory_space<vmem>>, vector<1x8x16xf32>
    %287 = vector.shape_cast %286 : vector<1x8x16xf32> to vector<8x16xf32>
    %c1_128 = arith.constant 1 : index
    %c0_129 = arith.constant 0 : index
    %c0_130 = arith.constant 0 : index
    %288 = vector.load %arg0[%c1_128, %c0_129, %c0_130] : memref<2x8x16xf32, #tpu.memory_space<vmem>>, vector<1x8x16xf32>
    %289 = vector.shape_cast %288 : vector<1x8x16xf32> to vector<8x16xf32>
    %290 = tpu.concatenate %287, %289 in 1 : vector<8x16xf32>, vector<8x16xf32> -> vector<8x32xf32>
    %291 = arith.addf %285, %290 : vector<8x32xf32>
    %cst_131 = arith.constant 5.000000e-01 : f32
    %292 = vector.broadcast %cst_131 : f32 to vector<8x32xf32>
    %293 = arith.mulf %292, %291 : vector<8x32xf32>
    %cst_132 = arith.constant 0.707106769 : f32
    %294 = vector.broadcast %cst_132 : f32 to vector<8x32xf32>
    %295 = arith.mulf %291, %294 : vector<8x32xf32>
    %296 = math.absf %295 : vector<8x32xf32>
    %cst_133 = arith.constant 5.000000e-01 : f32
    %297 = vector.broadcast %cst_133 : f32 to vector<8x32xf32>
    %298 = arith.mulf %297, %296 : vector<8x32xf32>
    %cst_134 = arith.constant 1.000000e+00 : f32
    %299 = vector.broadcast %cst_134 : f32 to vector<8x32xf32>
    %300 = arith.addf %299, %298 : vector<8x32xf32>
    %cst_135 = arith.constant 1.000000e+00 : f32
    %301 = vector.broadcast %cst_135 : f32 to vector<8x32xf32>
    %302 = arith.divf %301, %300 : vector<8x32xf32>
    %cst_136 = arith.constant 0.170872763 : f32
    %303 = vector.broadcast %cst_136 : f32 to vector<8x32xf32>
    %304 = arith.mulf %302, %303 : vector<8x32xf32>
    %cst_137 = arith.constant -0.822152256 : f32
    %305 = vector.broadcast %cst_137 : f32 to vector<8x32xf32>
    %306 = arith.addf %305, %304 : vector<8x32xf32>
    %307 = arith.mulf %302, %306 : vector<8x32xf32>
    %cst_138 = arith.constant 1.48851585 : f32
    %308 = vector.broadcast %cst_138 : f32 to vector<8x32xf32>
    %309 = arith.addf %308, %307 : vector<8x32xf32>
    %310 = arith.mulf %302, %309 : vector<8x32xf32>
    %cst_139 = arith.constant -1.13520396 : f32
    %311 = vector.broadcast %cst_139 : f32 to vector<8x32xf32>
    %312 = arith.addf %311, %310 : vector<8x32xf32>
    %313 = arith.mulf %302, %312 : vector<8x32xf32>
    %cst_140 = arith.constant 0.278868079 : f32
    %314 = vector.broadcast %cst_140 : f32 to vector<8x32xf32>
    %315 = arith.addf %314, %313 : vector<8x32xf32>
    %316 = arith.mulf %302, %315 : vector<8x32xf32>
    %cst_141 = arith.constant -0.186288059 : f32
    %317 = vector.broadcast %cst_141 : f32 to vector<8x32xf32>
    %318 = arith.addf %317, %316 : vector<8x32xf32>
    %319 = arith.mulf %302, %318 : vector<8x32xf32>
    %cst_142 = arith.constant 0.0967841818 : f32
    %320 = vector.broadcast %cst_142 : f32 to vector<8x32xf32>
    %321 = arith.addf %320, %319 : vector<8x32xf32>
    %322 = arith.mulf %302, %321 : vector<8x32xf32>
    %cst_143 = arith.constant 0.374091953 : f32
    %323 = vector.broadcast %cst_143 : f32 to vector<8x32xf32>
    %324 = arith.addf %323, %322 : vector<8x32xf32>
    %325 = arith.mulf %302, %324 : vector<8x32xf32>
    %cst_144 = arith.constant 1.00002372 : f32
    %326 = vector.broadcast %cst_144 : f32 to vector<8x32xf32>
    %327 = arith.addf %326, %325 : vector<8x32xf32>
    %328 = arith.mulf %302, %327 : vector<8x32xf32>
    %cst_145 = arith.constant -1.26551223 : f32
    %329 = vector.broadcast %cst_145 : f32 to vector<8x32xf32>
    %330 = arith.addf %329, %328 : vector<8x32xf32>
    %cst_146 = arith.constant 0.000000e+00 : f32
    %331 = vector.broadcast %cst_146 : f32 to vector<8x32xf32>
    %332 = arith.subf %331, %296 : vector<8x32xf32>
    %333 = arith.mulf %332, %296 : vector<8x32xf32>
    %334 = arith.addf %333, %330 : vector<8x32xf32>
    %335 = math.exp %334 : vector<8x32xf32>
    %336 = arith.mulf %302, %335 : vector<8x32xf32>
    %cst_147 = arith.constant 0.000000e+00 : f32
    %337 = vector.broadcast %cst_147 : f32 to vector<8x32xf32>
    %338 = arith.cmpf oge, %295, %337 : vector<8x32xf32>
    %cst_148 = arith.constant 1.000000e+00 : f32
    %339 = vector.broadcast %cst_148 : f32 to vector<8x32xf32>
    %340 = arith.subf %339, %336 : vector<8x32xf32>
    %cst_149 = arith.constant 1.000000e+00 : f32
    %341 = vector.broadcast %cst_149 : f32 to vector<8x32xf32>
    %342 = arith.subf %336, %341 : vector<8x32xf32>
    %343 = arith.select %338, %340, %342 : vector<8x32xi1>, vector<8x32xf32>
    %cst_150 = arith.constant 1.000000e+00 : f32
    %344 = vector.broadcast %cst_150 : f32 to vector<8x32xf32>
    %345 = arith.addf %344, %343 : vector<8x32xf32>
    %346 = arith.mulf %293, %345 : vector<8x32xf32>
    %347 = vector.extract_strided_slice %346 {offsets = [0, 0], sizes = [8, 16], strides = [1, 1]} : vector<8x32xf32> to vector<8x16xf32>
    %c0_151 = arith.constant 0 : index
    %c0_152 = arith.constant 0 : index
    %c0_153 = arith.constant 0 : index
    %348 = vector.load %arg6[%c0_151, %c0_152, %c0_153] : memref<2x8x16xf32, #tpu.memory_space<vmem>>, vector<1x8x16xf32>
    %349 = vector.shape_cast %348 : vector<1x8x16xf32> to vector<8x16xf32>
    %350 = vector.shape_cast %347 : vector<8x16xf32> to vector<1x8x16xf32>
    tpu.vector_store %arg6[%c0_151, %c0_152, %c0_153], %350 {strides = array<i32>} : memref<2x8x16xf32, #tpu.memory_space<vmem>>, vector<1x8x16xf32>,
    %351 = vector.extract_strided_slice %346 {offsets = [0, 16], sizes = [8, 16], strides = [1, 1]} : vector<8x32xf32> to vector<8x16xf32>
    %c1_154 = arith.constant 1 : index
    %c0_155 = arith.constant 0 : index
    %c0_156 = arith.constant 0 : index
    %352 = vector.load %arg6[%c1_154, %c0_155, %c0_156] : memref<2x8x16xf32, #tpu.memory_space<vmem>>, vector<1x8x16xf32>
    %353 = vector.shape_cast %352 : vector<1x8x16xf32> to vector<8x16xf32>
    %354 = vector.shape_cast %351 : vector<8x16xf32> to vector<1x8x16xf32>
    tpu.vector_store %arg6[%c1_154, %c0_155, %c0_156], %354 {strides = array<i32>} : memref<2x8x16xf32, #tpu.memory_space<vmem>>, vector<1x8x16xf32>,
    return
  }
}

</mosaic_0001>

<llo_original>
// kernel: res1d_block.1
$region0: #{res1d_block.1}
  #allocation0 [shape = 'u32[]', space=smem, size = 0x4, offset = 0x4, fixed_abs, tag = 'smem constant byte address 0x4 - core index']
  #allocation1 [shape = 'u32[144,128]{1,0:T(1,128)}', space=vmem, size = 0x12000, scoped, tag = 'internal scratch']
  %s0 = inlined_call_operand.vmem [shape: f32[2,8,16], index: 0, kind: input, shape index: {}]
  %s1 = inlined_call_operand.vmem [shape: f32[3,8,24], index: 1, kind: input, shape index: {}]
  %s2 = inlined_call_operand.vmem [shape: f32[3,8,1], index: 2, kind: input, shape index: {}]
  %s3 = inlined_call_operand.vmem [shape: f32[2,8,1], index: 3, kind: input, shape index: {}]
  %s4 = inlined_call_operand.vmem [shape: f32[2,8,1], index: 4, kind: input, shape index: {}]
  %s5 = inlined_call_operand.vmem [shape: f32[9,1,32], index: 5, kind: input, shape index: {}]
  %s6 = inlined_call_operand.hbm [shape: f32[2,8,16], index: 6, kind: output, shape index: {}]
  %s7 = sld [smem:[#allocation0]]
  $region34: #{res1d_block.1} parent=0
    _
  %s9 = ssub.s32 1, %s7
  %s10 = scalar_select 0, %s9, %s7
  $region1: #{res1d_block.1} parent=0
    #allocation2 [shape = 'u8[8192]{0}', space=vmem, size = 0x2000, scoped, tag = 'output window, operand 0, single buffered']
    #allocation3 [shape = 's32[1]{0}', space=sflag, size = 0x4, scoped, tag = 'scoped memory for res1d_block.1']
    %11 = vsyncpa [#allocation3], 0
    // Predicated region
    $region2: #{res1d_block.1} parent=1 // pred_check
      _
    $region3: #{res1d_block.1} parent=1 // pred_check_branch
      %13 = sbr.rel (0) target = $region5
    $region4: #{res1d_block.1} parent=1 // pred_region
      _
    $region5: #{res1d_block.1} parent=1 // pred_fallthru
      _
    // Predicated region
    $region6: #{res1d_block.1} parent=1 // pred_check
      _
    $region7: #{res1d_block.1} parent=1 // pred_check_branch
      %15 = sbr.rel (0) target = $region9
    $region8: #{res1d_block.1} parent=1 // pred_region
      _
    $region9: #{res1d_block.1} parent=1 // pred_fallthru
      _
    // Predicated region
    $region10: #{res1d_block.1} parent=1 // pred_check
      _
    $region11: #{res1d_block.1} parent=1 // pred_check_branch
      %17 = sbr.rel (0) target = $region13
    $region12: #{res1d_block.1} parent=1 // pred_region
      _
    $region13: #{res1d_block.1} parent=1 // pred_fallthru
      _
    // Predicated region
    $region14: #{res1d_block.1} parent=1 // pred_check
      _
    $region15: #{res1d_block.1} parent=1 // pred_check_branch
      %19 = sbr.rel (0) target = $region17
    $region16: #{res1d_block.1} parent=1 // pred_region
      _
    $region17: #{res1d_block.1} parent=1 // pred_fallthru
      _
    // Predicated region
    $region18: #{res1d_block.1} parent=1 // pred_check
      _
    $region19: #{res1d_block.1} parent=1 // pred_check_branch
      %21 = sbr.rel (0) target = $region21
    $region20: #{res1d_block.1} parent=1 // pred_region
      _
    $region21: #{res1d_block.1} parent=1 // pred_fallthru
      _
    // Predicated region
    $region22: #{res1d_block.1} parent=1 // pred_check
      _
    $region23: #{res1d_block.1} parent=1 // pred_check_branch
      %23 = sbr.rel (0) target = $region25
    $region24: #{res1d_block.1} parent=1 // pred_region
      _
    $region25: #{res1d_block.1} parent=1 // pred_fallthru
      _
    %v24 = vld [vmem:[%s0] sm:$0xff]
    %s25 = scalar_lea.vmem %s0, 8
    %v26 = vld [vmem:[%s25] sm:$0xff]
    %28 = vrot.lane.b32.xlu0 %v26, 16
    %v29 = vpop.permute.xlu0 %28
    %vm31 = vcmask 130048
    %v32 = vsel %vm31, %v24, %v29
    %34 = vrot.lane.b32.xlu0 %v32, 1
    %v35 = vpop.permute.xlu0 %34
    %vm37 = vcmask 7168
    %v38 = vsel %vm37, 0.0, %v35
    %v39 = vld [vmem:[%s5] sm:$0x1]
    %v41 = vlaneseq
    %v42 = vshrl.u32 %v41, 7
    %v43 = vsub.s32 0, %v42
    %v44 = vrot.slane %v39, %v43
    %v46 = vmul.f32 %v38, %v44
    %47 = vrot.lane.b32.xlu0 %v32, 127
    %v48 = vpop.permute.xlu0 %47
    %vm50 = vcmask 252928
    %v51 = vsel %vm50, %v48, 0.0
    %s52 = scalar_lea.vmem %s5, 2
    %v53 = vld [vmem:[%s52] sm:$0x1]
    %v55 = vlaneseq
    %v56 = vshrl.u32 %v55, 7
    %v57 = vsub.s32 0, %v56
    %v58 = vrot.slane %v53, %v57
    %v60 = vmul.f32 %v51, %v58
    %v61 = vld [vmem:[%s1] sm:$0xff]
    %v62 = vld [vmem:[%s2] sm:$0xff]
    %64 = vset.pattern.permute.xlu0 0
    %65 = vperm.xlu0 %64, %v62
    %v66 = vpop.permute.xlu0 %65
    %vm68 = vcmask 195584
    %v70 = vsel %vm68, %v61, 0
    %72 = vmatprep.subr.mxu0 0.0
    %73 = vmatpush1.msra.mxu0 %v46
    %74 = vmatprep.subr.mxu0 0.0
    %75 = vmatpush1.msra.mxu0 %v32
    %76 = vmatprep.subr.mxu0 0.0
    %77 = vmatpush1.msra.mxu0 %v60
    %78 = vmatprep.subr.mxu0 0.0
    %79 = vmatpush1.msra.mxu0 0.0
    %80 = vmatprep.subr.mxu0 0.0
    %81 = vmatpush1.msra.mxu0 0.0
    %82 = vmatprep.subr.mxu0 0.0
    %83 = vmatpush1.msra.mxu0 0.0
    %84 = vmatprep.subr.mxu0 0.0
    %85 = vmatpush1.msra.mxu0 0.0
    %86 = vmatprep.subr.mxu0 0.0
    %87 = vmatpush1.msra.mxu0 0.0
    %88 = vmatprep.subr.mxu0 0.0
    %89 = vmatpush1.msra.mxu0 0.0
    %90 = vmatprep.subr.mxu0 0.0
    %91 = vmatpush1.msra.mxu0 0.0
    %92 = vmatprep.subr.mxu0 0.0
    %93 = vmatpush1.msra.mxu0 0.0
    %94 = vmatprep.subr.mxu0 0.0
    %95 = vmatpush1.msra.mxu0 0.0
    %96 = vmatprep.subr.mxu0 0.0
    %97 = vmatpush1.msra.mxu0 0.0
    %98 = vmatprep.subr.mxu0 0.0
    %99 = vmatpush1.msra.mxu0 0.0
    %100 = vmatprep.subr.mxu0 0.0
    %101 = vmatpush1.msra.mxu0 0.0
    %102 = vmatprep.subr.mxu0 0.0
    %103 = vmatpush1.msra.mxu0 0.0
    %104 = vmatprep.subr.mxu0 0.0
    %105 = vmatpush1.msra.mxu0 0.0
    %106 = vmatprep.subr.mxu0 0.0
    %107 = vmatpush1.msra.mxu0 0.0
    %108 = vmatprep.subr.mxu0 0.0
    %109 = vmatpush1.msra.mxu0 0.0
    %110 = vmatprep.subr.mxu0 0.0
    %111 = vmatpush1.msra.mxu0 0.0
    %112 = vmatprep.subr.mxu0 0.0
    %113 = vmatpush1.msra.mxu0 0.0
    %114 = vmatprep.subr.mxu0 0.0
    %115 = vmatpush1.msra.mxu0 0.0
    %116 = vmatprep.subr.mxu0 0.0
    %117 = vmatpush1.msra.mxu0 0.0
    %118 = vmatprep.subr.mxu0 0.0
    %119 = vmatpush1.msra.mxu0 0.0
    %120 = vmatprep.subr.mxu0 0.0
    %121 = vmatpush1.msra.mxu0 0.0
    %122 = vmatprep.subr.mxu0 0.0
    %123 = vmatpush1.msra.mxu0 0.0
    %124 = vmatprep.subr.mxu0 0.0
    %125 = vmatpush1.msra.mxu0 0.0
    %126 = vmatprep.subr.mxu0 0.0
    %127 = vmatpush1.msra.mxu0 0.0
    %128 = vmatprep.subr.mxu0 0.0
    %129 = vmatpush1.msra.mxu0 0.0
    %130 = vmatprep.subr.mxu0 0.0
    %131 = vmatpush1.msra.mxu0 0.0
    %132 = vmatprep.subr.mxu0 0.0
    %133 = vmatpush1.msra.mxu0 0.0
    %134 = vmatprep.subr.mxu0 0.0
    %135 = vmatpush1.msra.mxu0 0.0
    %136 = vmatprep.mubr.f32.mxu0 0.0
    %137 = vmatmul.mubr.f32.gmra.mrb[0].mxu0 %v70
    %v138 = vpop.f32.mrb[0].mxu0
    %v139 = vadd.f32 %v66, %v138
    %v140 = vpop.f32.mrb[0].mxu0
    %141 = vdwg.mxu0
    %v142 = vmul.f32 %v139, 0.5
    %v143 = vmul.f32 %v139, 0.70710677
    %v144 = vand.u32 2147483647, %v143
    %v145 = vmul.f32 %v144, 0.5
    %v146 = vadd.f32 %v145, 1.0
    %v147 = vrcp.pop %v146
    %v148 = vmul.f32 1.0, %v147
    %v149 = vmul.f32 %v148, 0.17087276
    %v150 = vadd.f32 %v149, -0.82215226
    %v151 = vmul.f32 %v148, %v150
    %v152 = vadd.f32 %v151, 1.4885159
    %v153 = vmul.f32 %v148, %v152
    %v154 = vadd.f32 %v153, -1.135204
    %v155 = vmul.f32 %v148, %v154
    %v156 = vadd.f32 %v155, 0.27886808
    %v157 = vmul.f32 %v148, %v156
    %v158 = vadd.f32 %v157, -0.18628806
    %v159 = vmul.f32 %v148, %v158
    %v160 = vadd.f32 %v159, 0.09678418
    %v161 = vmul.f32 %v148, %v160
    %v162 = vadd.f32 %v161, 0.37409195
    %v163 = vmul.f32 %v148, %v162
    %v164 = vadd.f32 %v163, 1.0000237
    %v165 = vmul.f32 %v148, %v164
    %v166 = vadd.f32 %v165, -1.2655122
    %v167 = vsub.f32 0.0, %v144
    %v168 = vmul.f32 %v167, %v144
    %v169 = vadd.f32 %v168, %v166
    %v170 = vmul.f32 %v169, 1.442695
    %v171 = vpow.pop %v170
    %v172 = vmul.f32 %v148, %v171
    %vm173 = vcmp.ge.f32.partialorder %v143, 0.0
    %v174 = vsub.f32 1.0, %v172
    %v175 = vsub.f32 %v172, 1.0
    %v176 = vsel %vm173, %v174, %v175
    %v177 = vadd.f32 %v176, 1.0
    %v178 = vmul.f32 %v142, %v177
    %vm179 = vcmask 261120
    %v180 = vsel %vm179, %v178, 0.0
    %181 = vadd.xlane.f32.xlu0 %v180
    %v182 = vpop.xlane.xlu0 %181
    %v183 = vmul.f32 %v178, %v178
    %v184 = vsel %vm179, %v183, 0.0
    %185 = vadd.xlane.f32.xlu0 %v184
    %v186 = vpop.xlane.xlu0 %185
    %v187 = vmul.f32 %v182, 0.03125
    %v188 = vmul.f32 %v186, 0.03125
    %v189 = vmul.f32 %v187, %v187
    %v190 = vsub.f32 %v188, %v189
    %v191 = vld [vmem:[%s3] sm:$0xff]
    %v192 = vadd.f32 %v190, 1e-05
    %v193 = vrsqrt.pop %v192
    %v194 = vmul.f32 %v191, %v193
    %v195 = vld [vmem:[%s4] sm:$0xff]
    %v196 = vmul.f32 %v187, %v194
    %v197 = vsub.f32 %v195, %v196
    %199 = vset.pattern.permute.xlu0 0
    %200 = vperm.xlu0 %199, %v194
    %v201 = vpop.permute.xlu0 %200
    %v203 = vmul.f32 %v178, %v201
    %205 = vset.pattern.permute.xlu0 0
    %206 = vperm.xlu0 %205, %v197
    %v207 = vpop.permute.xlu0 %206
    %v209 = vadd.f32 %v203, %v207
    %211 = vrot.lane.b32.xlu0 %v209, 2
    %v212 = vpop.permute.xlu0 %211
    %vm214 = vcmask 15360
    %v215 = vsel %vm214, 0.0, %v212
    %s216 = scalar_lea.vmem %s5, 3
    %v217 = vld [vmem:[%s216] sm:$0x1]
    %v219 = vlaneseq
    %v220 = vshrl.u32 %v219, 7
    %v221 = vsub.s32 0, %v220
    %v222 = vrot.slane %v217, %v221
    %v224 = vmul.f32 %v215, %v222
    %225 = vrot.lane.b32.xlu0 %v209, 126
    %v226 = vpop.permute.xlu0 %225
    %vm228 = vcmask 244736
    %v229 = vsel %vm228, %v226, 0.0
    %s230 = scalar_lea.vmem %s5, 5
    %v231 = vld [vmem:[%s230] sm:$0x1]
    %v233 = vlaneseq
    %v234 = vshrl.u32 %v233, 7
    %v235 = vsub.s32 0, %v234
    %v236 = vrot.slane %v231, %v235
    %v238 = vmul.f32 %v229, %v236
    %s239 = scalar_lea.vmem %s1, 8
    %v240 = vld [vmem:[%s239] sm:$0xff]
    %s241 = scalar_lea.vmem %s2, 8
    %v242 = vld [vmem:[%s241] sm:$0xff]
    %244 = vset.pattern.permute.xlu0 0
    %245 = vperm.xlu0 %244, %v242
    %v246 = vpop.permute.xlu0 %245
    %v249 = vsel %vm68, %v240, 0
    %251 = vmatprep.subr.mxu0 0.0
    %252 = vmatpush1.msra.mxu0 %v224
    %253 = vmatprep.subr.mxu0 0.0
    %254 = vmatpush1.msra.mxu0 %v209
    %255 = vmatprep.subr.mxu0 0.0
    %256 = vmatpush1.msra.mxu0 %v238
    %257 = vmatprep.subr.mxu0 0.0
    %258 = vmatpush1.msra.mxu0 0.0
    %259 = vmatprep.subr.mxu0 0.0
    %260 = vmatpush1.msra.mxu0 0.0
    %261 = vmatprep.subr.mxu0 0.0
    %262 = vmatpush1.msra.mxu0 0.0
    %263 = vmatprep.subr.mxu0 0.0
    %264 = vmatpush1.msra.mxu0 0.0
    %265 = vmatprep.subr.mxu0 0.0
    %266 = vmatpush1.msra.mxu0 0.0
    %267 = vmatprep.subr.mxu0 0.0
    %268 = vmatpush1.msra.mxu0 0.0
    %269 = vmatprep.subr.mxu0 0.0
    %270 = vmatpush1.msra.mxu0 0.0
    %271 = vmatprep.subr.mxu0 0.0
    %272 = vmatpush1.msra.mxu0 0.0
    %273 = vmatprep.subr.mxu0 0.0
    %274 = vmatpush1.msra.mxu0 0.0
    %275 = vmatprep.subr.mxu0 0.0
    %276 = vmatpush1.msra.mxu0 0.0
    %277 = vmatprep.subr.mxu0 0.0
    %278 = vmatpush1.msra.mxu0 0.0
    %279 = vmatprep.subr.mxu0 0.0
    %280 = vmatpush1.msra.mxu0 0.0
    %281 = vmatprep.subr.mxu0 0.0
    %282 = vmatpush1.msra.mxu0 0.0
    %283 = vmatprep.subr.mxu0 0.0
    %284 = vmatpush1.msra.mxu0 0.0
    %285 = vmatprep.subr.mxu0 0.0
    %286 = vmatpush1.msra.mxu0 0.0
    %287 = vmatprep.subr.mxu0 0.0
    %288 = vmatpush1.msra.mxu0 0.0
    %289 = vmatprep.subr.mxu0 0.0
    %290 = vmatpush1.msra.mxu0 0.0
    %291 = vmatprep.subr.mxu0 0.0
    %292 = vmatpush1.msra.mxu0 0.0
    %293 = vmatprep.subr.mxu0 0.0
    %294 = vmatpush1.msra.mxu0 0.0
    %295 = vmatprep.subr.mxu0 0.0
    %296 = vmatpush1.msra.mxu0 0.0
    %297 = vmatprep.subr.mxu0 0.0
    %298 = vmatpush1.msra.mxu0 0.0
    %299 = vmatprep.subr.mxu0 0.0
    %300 = vmatpush1.msra.mxu0 0.0
    %301 = vmatprep.subr.mxu0 0.0
    %302 = vmatpush1.msra.mxu0 0.0
    %303 = vmatprep.subr.mxu0 0.0
    %304 = vmatpush1.msra.mxu0 0.0
    %305 = vmatprep.subr.mxu0 0.0
    %306 = vmatpush1.msra.mxu0 0.0
    %307 = vmatprep.subr.mxu0 0.0
    %308 = vmatpush1.msra.mxu0 0.0
    %309 = vmatprep.subr.mxu0 0.0
    %310 = vmatpush1.msra.mxu0 0.0
    %311 = vmatprep.subr.mxu0 0.0
    %312 = vmatpush1.msra.mxu0 0.0
    %313 = vmatprep.subr.mxu0 0.0
    %314 = vmatpush1.msra.mxu0 0.0
    %315 = vmatprep.mubr.f32.mxu0 0.0
    %316 = vmatmul.mubr.f32.gmra.mrb[0].mxu0 %v249
    %v317 = vpop.f32.mrb[0].mxu0
    %v318 = vadd.f32 %v246, %v317
    %v319 = vpop.f32.mrb[0].mxu0
    %320 = vdwg.mxu0
    %v321 = vmul.f32 %v318, 0.5
    %v322 = vmul.f32 %v318, 0.70710677
    %v323 = vand.u32 2147483647, %v322
    %v324 = vmul.f32 %v323, 0.5
    %v325 = vadd.f32 %v324, 1.0
    %v326 = vrcp.pop %v325
    %v327 = vmul.f32 1.0, %v326
    %v328 = vmul.f32 %v327, 0.17087276
    %v329 = vadd.f32 %v328, -0.82215226
    %v330 = vmul.f32 %v327, %v329
    %v331 = vadd.f32 %v330, 1.4885159
    %v332 = vmul.f32 %v327, %v331
    %v333 = vadd.f32 %v332, -1.135204
    %v334 = vmul.f32 %v327, %v333
    %v335 = vadd.f32 %v334, 0.27886808
    %v336 = vmul.f32 %v327, %v335
    %v337 = vadd.f32 %v336, -0.18628806
    %v338 = vmul.f32 %v327, %v337
    %v339 = vadd.f32 %v338, 0.09678418
    %v340 = vmul.f32 %v327, %v339
    %v341 = vadd.f32 %v340, 0.37409195
    %v342 = vmul.f32 %v327, %v341
    %v343 = vadd.f32 %v342, 1.0000237
    %v344 = vmul.f32 %v327, %v343
    %v345 = vadd.f32 %v344, -1.2655122
    %v346 = vsub.f32 0.0, %v323
    %v347 = vmul.f32 %v346, %v323
    %v348 = vadd.f32 %v347, %v345
    %v349 = vmul.f32 %v348, 1.442695
    %v350 = vpow.pop %v349
    %v351 = vmul.f32 %v327, %v350
    %vm352 = vcmp.ge.f32.partialorder %v322, 0.0
    %v353 = vsub.f32 1.0, %v351
    %v354 = vsub.f32 %v351, 1.0
    %v355 = vsel %vm352, %v353, %v354
    %v356 = vadd.f32 %v355, 1.0
    %v357 = vmul.f32 %v321, %v356
    %v358 = vsel %vm179, %v357, 0.0
    %359 = vadd.xlane.f32.xlu0 %v358
    %v360 = vpop.xlane.xlu0 %359
    %v361 = vmul.f32 %v357, %v357
    %v362 = vsel %vm179, %v361, 0.0
    %363 = vadd.xlane.f32.xlu0 %v362
    %v364 = vpop.xlane.xlu0 %363
    %v365 = vmul.f32 %v360, 0.03125
    %v366 = vmul.f32 %v364, 0.03125
    %v367 = vmul.f32 %v365, %v365
    %v368 = vsub.f32 %v366, %v367
    %s369 = scalar_lea.vmem %s3, 8
    %v370 = vld [vmem:[%s369] sm:$0xff]
    %v371 = vadd.f32 %v368, 1e-05
    %v372 = vrsqrt.pop %v371
    %v373 = vmul.f32 %v370, %v372
    %s374 = scalar_lea.vmem %s4, 8
    %v375 = vld [vmem:[%s374] sm:$0xff]
    %v376 = vmul.f32 %v365, %v373
    %v377 = vsub.f32 %v375, %v376
    %379 = vset.pattern.permute.xlu0 0
    %380 = vperm.xlu0 %379, %v373
    %v381 = vpop.permute.xlu0 %380
    %v383 = vmul.f32 %v357, %v381
    %385 = vset.pattern.permute.xlu0 0
    %386 = vperm.xlu0 %385, %v377
    %v387 = vpop.permute.xlu0 %386
    %v389 = vadd.f32 %v383, %v387
    %391 = vrot.lane.b32.xlu0 %v389, 4
    %v392 = vpop.permute.xlu0 %391
    %vm394 = vcmask 31744
    %v395 = vsel %vm394, 0.0, %v392
    %s396 = scalar_lea.vmem %s5, 6
    %v397 = vld [vmem:[%s396] sm:$0x1]
    %v399 = vlaneseq
    %v400 = vshrl.u32 %v399, 7
    %v401 = vsub.s32 0, %v400
    %v402 = vrot.slane %v397, %v401
    %v404 = vmul.f32 %v395, %v402
    %405 = vrot.lane.b32.xlu0 %v389, 124
    %v406 = vpop.permute.xlu0 %405
    %vm408 = vcmask 228352
    %v409 = vsel %vm408, %v406, 0.0
    %s410 = scalar_lea.vmem %s5, 8
    %v411 = vld [vmem:[%s410] sm:$0x1]
    %v413 = vlaneseq
    %v414 = vshrl.u32 %v413, 7
    %v415 = vsub.s32 0, %v414
    %v416 = vrot.slane %v411, %v415
    %v418 = vmul.f32 %v409, %v416
    %s419 = scalar_lea.vmem %s1, 16
    %v420 = vld [vmem:[%s419] sm:$0xff]
    %s421 = scalar_lea.vmem %s2, 16
    %v422 = vld [vmem:[%s421] sm:$0xff]
    %424 = vset.pattern.permute.xlu0 0
    %425 = vperm.xlu0 %424, %v422
    %v426 = vpop.permute.xlu0 %425
    %v429 = vsel %vm68, %v420, 0
    %431 = vmatprep.subr.mxu0 0.0
    %432 = vmatpush1.msra.mxu0 %v404
    %433 = vmatprep.subr.mxu0 0.0
    %434 = vmatpush1.msra.mxu0 %v389
    %435 = vmatprep.subr.mxu0 0.0
    %436 = vmatpush1.msra.mxu0 %v418
    %437 = vmatprep.subr.mxu0 0.0
    %438 = vmatpush1.msra.mxu0 0.0
    %439 = vmatprep.subr.mxu0 0.0
    %440 = vmatpush1.msra.mxu0 0.0
    %441 = vmatprep.subr.mxu0 0.0
    %442 = vmatpush1.msra.mxu0 0.0
    %443 = vmatprep.subr.mxu0 0.0
    %444 = vmatpush1.msra.mxu0 0.0
    %445 = vmatprep.subr.mxu0 0.0
    %446 = vmatpush1.msra.mxu0 0.0
    %447 = vmatprep.subr.mxu0 0.0
    %448 = vmatpush1.msra.mxu0 0.0
    %449 = vmatprep.subr.mxu0 0.0
    %450 = vmatpush1.msra.mxu0 0.0
    %451 = vmatprep.subr.mxu0 0.0
    %452 = vmatpush1.msra.mxu0 0.0
    %453 = vmatprep.subr.mxu0 0.0
    %454 = vmatpush1.msra.mxu0 0.0
    %455 = vmatprep.subr.mxu0 0.0
    %456 = vmatpush1.msra.mxu0 0.0
    %457 = vmatprep.subr.mxu0 0.0
    %458 = vmatpush1.msra.mxu0 0.0
    %459 = vmatprep.subr.mxu0 0.0
    %460 = vmatpush1.msra.mxu0 0.0
    %461 = vmatprep.subr.mxu0 0.0
    %462 = vmatpush1.msra.mxu0 0.0
    %463 = vmatprep.subr.mxu0 0.0
    %464 = vmatpush1.msra.mxu0 0.0
    %465 = vmatprep.subr.mxu0 0.0
    %466 = vmatpush1.msra.mxu0 0.0
    %467 = vmatprep.subr.mxu0 0.0
    %468 = vmatpush1.msra.mxu0 0.0
    %469 = vmatprep.subr.mxu0 0.0
    %470 = vmatpush1.msra.mxu0 0.0
    %471 = vmatprep.subr.mxu0 0.0
    %472 = vmatpush1.msra.mxu0 0.0
    %473 = vmatprep.subr.mxu0 0.0
    %474 = vmatpush1.msra.mxu0 0.0
    %475 = vmatprep.subr.mxu0 0.0
    %476 = vmatpush1.msra.mxu0 0.0
    %477 = vmatprep.subr.mxu0 0.0
    %478 = vmatpush1.msra.mxu0 0.0
    %479 = vmatprep.subr.mxu0 0.0
    %480 = vmatpush1.msra.mxu0 0.0
    %481 = vmatprep.subr.mxu0 0.0
    %482 = vmatpush1.msra.mxu0 0.0
    %483 = vmatprep.subr.mxu0 0.0
    %484 = vmatpush1.msra.mxu0 0.0
    %485 = vmatprep.subr.mxu0 0.0
    %486 = vmatpush1.msra.mxu0 0.0
    %487 = vmatprep.subr.mxu0 0.0
    %488 = vmatpush1.msra.mxu0 0.0
    %489 = vmatprep.subr.mxu0 0.0
    %490 = vmatpush1.msra.mxu0 0.0
    %491 = vmatprep.subr.mxu0 0.0
    %492 = vmatpush1.msra.mxu0 0.0
    %493 = vmatprep.subr.mxu0 0.0
    %494 = vmatpush1.msra.mxu0 0.0
    %495 = vmatprep.mubr.f32.mxu0 0.0
    %496 = vmatmul.mubr.f32.gmra.mrb[0].mxu0 %v429
    %v497 = vpop.f32.mrb[0].mxu0
    %v498 = vadd.f32 %v426, %v497
    %v499 = vpop.f32.mrb[0].mxu0
    %500 = vdwg.mxu0
    %v501 = vmul.f32 %v498, 0.5
    %v502 = vmul.f32 %v498, 0.70710677
    %v503 = vand.u32 2147483647, %v502
    %v504 = vmul.f32 %v503, 0.5
    %v505 = vadd.f32 %v504, 1.0
    %v506 = vrcp.pop %v505
    %v507 = vmul.f32 1.0, %v506
    %v508 = vmul.f32 %v507, 0.17087276
    %v509 = vadd.f32 %v508, -0.82215226
    %v510 = vmul.f32 %v507, %v509
    %v511 = vadd.f32 %v510, 1.4885159
    %v512 = vmul.f32 %v507, %v511
    %v513 = vadd.f32 %v512, -1.135204
    %v514 = vmul.f32 %v507, %v513
    %v515 = vadd.f32 %v514, 0.27886808
    %v516 = vmul.f32 %v507, %v515
    %v517 = vadd.f32 %v516, -0.18628806
    %v518 = vmul.f32 %v507, %v517
    %v519 = vadd.f32 %v518, 0.09678418
    %v520 = vmul.f32 %v507, %v519
    %v521 = vadd.f32 %v520, 0.37409195
    %v522 = vmul.f32 %v507, %v521
    %v523 = vadd.f32 %v522, 1.0000237
    %v524 = vmul.f32 %v507, %v523
    %v525 = vadd.f32 %v524, -1.2655122
    %v526 = vsub.f32 0.0, %v503
    %v527 = vmul.f32 %v526, %v503
    %v528 = vadd.f32 %v527, %v525
    %v529 = vmul.f32 %v528, 1.442695
    %v530 = vpow.pop %v529
    %v531 = vmul.f32 %v507, %v530
    %vm532 = vcmp.ge.f32.partialorder %v502, 0.0
    %v533 = vsub.f32 1.0, %v531
    %v534 = vsub.f32 %v531, 1.0
    %v535 = vsel %vm532, %v533, %v534
    %v536 = vadd.f32 %v535, 1.0
    %v537 = vmul.f32 %v501, %v536
    %v538 = vadd.f32 %v537, %v32
    %v539 = vmul.f32 %v538, 0.5
    %v540 = vmul.f32 %v538, 0.70710677
    %v541 = vand.u32 2147483647, %v540
    %v542 = vmul.f32 %v541, 0.5
    %v543 = vadd.f32 %v542, 1.0
    %v544 = vrcp.pop %v543
    %v545 = vmul.f32 1.0, %v544
    %v546 = vmul.f32 %v545, 0.17087276
    %v547 = vadd.f32 %v546, -0.82215226
    %v548 = vmul.f32 %v545, %v547
    %v549 = vadd.f32 %v548, 1.4885159
    %v550 = vmul.f32 %v545, %v549
    %v551 = vadd.f32 %v550, -1.135204
    %v552 = vmul.f32 %v545, %v551
    %v553 = vadd.f32 %v552, 0.27886808
    %v554 = vmul.f32 %v545, %v553
    %v555 = vadd.f32 %v554, -0.18628806
    %v556 = vmul.f32 %v545, %v555
    %v557 = vadd.f32 %v556, 0.09678418
    %v558 = vmul.f32 %v545, %v557
    %v559 = vadd.f32 %v558, 0.37409195
    %v560 = vmul.f32 %v545, %v559
    %v561 = vadd.f32 %v560, 1.0000237
    %v562 = vmul.f32 %v545, %v561
    %v563 = vadd.f32 %v562, -1.2655122
    %v564 = vsub.f32 0.0, %v541
    %v565 = vmul.f32 %v564, %v541
    %v566 = vadd.f32 %v565, %v563
    %v567 = vmul.f32 %v566, 1.442695
    %v568 = vpow.pop %v567
    %v569 = vmul.f32 %v545, %v568
    %vm570 = vcmp.ge.f32.partialorder %v540, 0.0
    %v571 = vsub.f32 1.0, %v569
    %v572 = vsub.f32 %v569, 1.0
    %v573 = vsel %vm570, %v571, %v572
    %v574 = vadd.f32 %v573, 1.0
    %v575 = vmul.f32 %v539, %v574
    %576 = vst.msk [vmem:[#allocation2] sm:$0xff] %vm31, %v575
    %578 = vrot.lane.b32.xlu0 %v575, 112
    %v579 = vpop.permute.xlu0 %578
    %s581 = scalar_lea.vmem [#allocation2], 8
    %582 = vst.msk [vmem:[%s581] sm:$0xff] %vm31, %v579
    // Predicated region
    $region26: #{res1d_block.1} parent=1 // pred_check
      _
    $region27: #{res1d_block.1} parent=1 // pred_check_branch
      %584 = sbr.rel (0) target = $region29
    $region28: #{res1d_block.1} parent=1 // pred_region
      %s586 = ssub.s32 256, 256
      %587 = vsyncadd [#allocation3], %s586
      %s588 = sshll.u32 [#allocation2], 4
      %s589 = int_to_ptr.vmem [resolvable:$true] %s588
      %594 = dma.vmem_to_hbm [thread:$0]  %s589, 256, %s6, [#allocation3], 128, 128, 8
    $region29: #{res1d_block.1} parent=1 // pred_fallthru
      _
    // Predicated region
    $region30: #{res1d_block.1} parent=1 // pred_check
      _
    $region31: #{res1d_block.1} parent=1 // pred_check_branch
      %596 = sbr.rel (0) target = $region33
    $region32: #{res1d_block.1} parent=1 // pred_region
      %597 = dma.done [#allocation3], 256
    $region33: #{res1d_block.1} parent=1 // pred_fallthru
      _
    %598 = vsyncpa [#allocation3], 1

</llo_original>
